<compile_context>
chip_gen: v5e
topology: v5e:2x2
jax: 0.10.0
libtpu: 0.0.40
codegen_flags: <defaults>
</compile_context>

<pallas_src>
import functools

import jax
import jax.numpy as jnp
import numpy as np
from jax.experimental import pallas as pl
from jax.experimental.pallas import tpu as pltpu

LANE = 128


def _convlstm_kernel(p_ref, w_ref, c_ref, h_out_ref, c_out_ref, *, HID):
    # p_ref    : (1, Kp, MT)   bf16  im2col patches^T (incl. constant-1 bias row)
    # w_ref    : (4*HID, Kp)   bf16  repacked conv weight (incl. bias column)
    # c_ref    : (1, HID, MT)  f32   previous cell state (flattened NCHW tile)
    # h_out/c_out : (1, HID, MT)
    # Single MXU matmul: (4*HID, Kp) x (Kp, MT) -> (4*HID, MT), f32 accumulate.
    acc = jnp.dot(w_ref[...], p_ref[0], preferred_element_type=jnp.float32)

    # Gates are contiguous sublane blocks [i | f | o | g] along the first axis.
    # sigmoid(x) = 0.5*(tanh(0.5*x) + 1)  -> EUP, one pass for i, f, o.
    ifo = 0.5 * (jnp.tanh(0.5 * acc[: 3 * HID, :]) + 1.0)
    g = jnp.tanh(acc[3 * HID :, :])

    i = ifo[0 * HID : 1 * HID, :]
    f = ifo[1 * HID : 2 * HID, :]
    o = ifo[2 * HID : 3 * HID, :]

    c_prev = c_ref[0]
    c_next = f * c_prev + i * g
    h_next = o * jnp.tanh(c_next)

    h_out_ref[0] = h_next.astype(h_out_ref.dtype)
    c_out_ref[0] = c_next.astype(c_out_ref.dtype)


def conv_lstm_cell(x, h_prev, c_prev, weight, bias, kernel_size):
    """ConvLSTMCell.forward.

    x       : (B, Cin, H, W)  float32, NCHW (PyTorch convention)
    h_prev  : (B, HID, H, W)
    c_prev  : (B, HID, H, W)
    weight  : (4*HID, Cin+HID, KH, KW)  nn.Conv2d weight (OIHW)
    bias    : (4*HID,)
    returns : (h_next, c_next), each (B, HID, H, W)
    """
    B, Cin, H, W = x.shape
    HID = h_prev.shape[1]
    KH, KW = kernel_size
    # PyTorch module uses padding = kernel_size[0]//2 on BOTH dims; shapes only
    # stay consistent (h_next vs c_prev) for odd square kernels.
    assert KH == KW and KH % 2 == 1, "ConvLSTMCell requires odd square kernels"
    pad = KH // 2
    C = Cin + HID
    K = KH * KW * C
    M = H * W
    MT = LANE if M % LANE == 0 else M          # pixels per tile (lane-dense)
    Kp = max(((K + 1 + LANE - 1) // LANE) * LANE, LANE)   # +1 bias row, pad to 128

    # ---- wrapper-side glue (plain JAX): im2col + weight repack, all NCHW ----
    comb = jnp.concatenate([x, h_prev], axis=1)                       # (B, C, H, W)
    comb_p = jnp.pad(comb, ((0, 0), (0, 0), (pad, pad), (pad, pad)))
    taps = [comb_p[:, :, ky:ky + H, kx:kx + W]
            for ky in range(KH) for kx in range(KW)]
    patches = jnp.stack(taps, axis=1).reshape(B, K, M)                # tap-major, ch-minor
    patches = jnp.pad(patches, ((0, 0), (0, Kp - K), (0, 0)))
    patches = patches.at[:, K, :].set(1.0)                            # bias row
    patches = patches.astype(jnp.bfloat16)

    # (O, I, KH, KW) -> (O, KH, KW, I) -> (O, K), then bias column at k = K.
    w_r = jnp.transpose(weight, (0, 2, 3, 1)).reshape(4 * HID, K)
    w_r = jnp.pad(w_r, ((0, 0), (0, Kp - K)))
    w_r = w_r.at[:, K].set(bias)
    w_r = w_r.astype(jnp.bfloat16)

    c_flat = c_prev.reshape(B, HID, M).astype(jnp.float32)

    kernel = functools.partial(_convlstm_kernel, HID=HID)

    h_flat, c_next_flat = pl.pallas_call(
        kernel,
        out_shape=(jax.ShapeDtypeStruct((B, HID, M), jnp.float32),
                   jax.ShapeDtypeStruct((B, HID, M), jnp.float32)),
        grid_spec=pltpu.PrefetchScalarGridSpec(
            num_scalar_prefetch=0,
            grid=(B, M // MT),
            in_specs=[
                pl.BlockSpec((1, Kp, MT), lambda b, m: (b, 0, m)),
                pl.BlockSpec((4 * HID, Kp), lambda b, m: (0, 0)),
                pl.BlockSpec((1, HID, MT), lambda b, m: (b, 0, m)),
            ],
            out_specs=[
                pl.BlockSpec((1, HID, MT), lambda b, m: (b, 0, m)),
                pl.BlockSpec((1, HID, MT), lambda b, m: (b, 0, m)),
            ],
        ),
        compiler_params=pltpu.CompilerParams(
            dimension_semantics=("parallel", "parallel")),
    )(patches, w_r, c_flat)

    # Flattened NCHW -> NCHW (pure reshape, no transpose).
    h_next = h_flat.reshape(B, HID, H, W)
    c_next = c_next_flat.reshape(B, HID, H, W)
    return h_next, c_next


def conv_lstm_cell_ref(x, h_prev, c_prev, weight, bias, kernel_size):
    """Pure-JAX f32 reference identical to the PyTorch forward."""
    pad = kernel_size[0] // 2
    combined = jnp.concatenate([x, h_prev], axis=1)
    out = jax.lax.conv_general_dilated(
        combined, weight, window_strides=(1, 1),
        padding=[(pad, pad), (pad, pad)],
        dimension_numbers=("NCHW", "OIHW", "NCHW"))
    out = out + bias[None, :, None, None]
    cc_i, cc_f, cc_o, cc_g = jnp.split(out, 4, axis=1)
    i = jax.nn.sigmoid(cc_i)
    f = jax.nn.sigmoid(cc_f)
    o = jax.nn.sigmoid(cc_o)
    g = jnp.tanh(cc_g)
    c_next = f * c_prev + i * g
    h_next = o * jnp.tanh(c_next)
    return h_next, c_next


if __name__ == "__main__":
    B, Cin, HID, H, W = 2, 4, 32, 16, 16
    K = (3, 3)

    key = jax.random.PRNGKey(0)
    kx, kh, kc, kw_, kb = jax.random.split(key, 5)

    x = jax.random.normal(kx, (B, Cin, H, W), dtype=jnp.float32)
    h_prev = jax.random.normal(kh, (B, HID, H, W), dtype=jnp.float32)
    c_prev = jax.random.normal(kc, (B, HID, H, W), dtype=jnp.float32)

    # deterministic synthetic parameters (nn.Conv2d(Cin+HID, 4*HID, 3, padding=1))
    fan_in = (Cin + HID) * K[0] * K[1]
    weight = jax.random.normal(kw_, (4 * HID, Cin + HID, K[0], K[1]),
                               dtype=jnp.float32) / jnp.sqrt(fan_in)
    bias = jax.random.normal(kb, (4 * HID,), dtype=jnp.float32) * 0.1

    h_next, c_next = conv_lstm_cell(x, h_prev, c_prev, weight, bias, K)
    jax.block_until_ready((h_next, c_next))

    h_ref, c_ref = conv_lstm_cell_ref(x, h_prev, c_prev, weight, bias, K)
    # bf16 MXU operands with f32 accumulation -> looser tolerance than pure f32.
    np.testing.assert_allclose(np.asarray(h_next), np.asarray(h_ref),
                               rtol=5e-2, atol=5e-2)
    np.testing.assert_allclose(np.asarray(c_next), np.asarray(c_ref),
                               rtol=5e-2, atol=5e-2)

    print("KERNEL_OK")
</pallas_src>

<mosaic_0001>
module attributes {stable_mosaic.version = 11 : i64} {
  func.func @_convlstm_kernel(%arg0: i32, %arg1: i32, %arg2: memref<1x384x128xbf16, #tpu.memory_space<vmem>>, %arg3: memref<128x384xbf16, #tpu.memory_space<vmem>>, %arg4: memref<1x32x128xf32, #tpu.memory_space<vmem>>, %arg5: memref<1x32x128xf32, #tpu.memory_space<vmem>>, %arg6: memref<1x32x128xf32, #tpu.memory_space<vmem>>) attributes {dimension_semantics = [#tpu.dimension_semantics<parallel>, #tpu.dimension_semantics<parallel>], iteration_bounds = array<i64: 2, 2>, scalar_prefetch = 0 : i64, scratch_operands = 0 : i64, tpu.core_type = #tpu.core_type<tc>, window_params = [{transform_indices = @transform_0, window_bounds = array<i64: 1, 384, 128>}, {pipeline_mode = #tpu.pipeline_mode<synchronous>, transform_indices = @transform_1, window_bounds = array<i64: 128, 384>}, {transform_indices = @transform_2, window_bounds = array<i64: 1, 32, 128>}, {transform_indices = @transform_3, window_bounds = array<i64: 1, 32, 128>}, {transform_indices = @transform_4, window_bounds = array<i64: 1, 32, 128>}]} {
    %c0 = arith.constant 0 : index
    %c0_0 = arith.constant 0 : index
    %0 = vector.load %arg3[%c0, %c0_0] : memref<128x384xbf16, #tpu.memory_space<vmem>>, vector<128x384xbf16>
    %c0_1 = arith.constant 0 : index
    %c0_2 = arith.constant 0 : index
    %c0_3 = arith.constant 0 : index
    %1 = vector.load %arg2[%c0_1, %c0_2, %c0_3] : memref<1x384x128xbf16, #tpu.memory_space<vmem>>, vector<1x384x128xbf16>
    %2 = vector.shape_cast %1 : vector<1x384x128xbf16> to vector<384x128xbf16>
    %cst = arith.constant dense<0.000000e+00> : vector<128x128xf32>
    %3 = tpu.matmul %0, %2, %cst {dimension_numbers = #tpu.dot_dimension_numbers<[1], [0], [0], [1], [0, 0, 1, 1], [], []>} : vector<128x384xbf16>, vector<384x128xbf16>, vector<128x128xf32> -> vector<128x128xf32>
    %4 = vector.extract_strided_slice %3 {offsets = [0, 0], sizes = [96, 128], strides = [1, 1]} : vector<128x128xf32> to vector<96x128xf32>
    %cst_4 = arith.constant 5.000000e-01 : f32
    %5 = vector.broadcast %cst_4 : f32 to vector<96x128xf32>
    %6 = arith.mulf %5, %4 : vector<96x128xf32>
    %7 = math.tanh %6 : vector<96x128xf32>
    %cst_5 = arith.constant 1.000000e+00 : f32
    %8 = vector.broadcast %cst_5 : f32 to vector<96x128xf32>
    %9 = arith.addf %7, %8 : vector<96x128xf32>
    %cst_6 = arith.constant 5.000000e-01 : f32
    %10 = vector.broadcast %cst_6 : f32 to vector<96x128xf32>
    %11 = arith.mulf %10, %9 : vector<96x128xf32>
    %12 = vector.extract_strided_slice %3 {offsets = [96, 0], sizes = [32, 128], strides = [1, 1]} : vector<128x128xf32> to vector<32x128xf32>
    %13 = math.tanh %12 : vector<32x128xf32>
    %14 = vector.extract_strided_slice %11 {offsets = [0, 0], sizes = [32, 128], strides = [1, 1]} : vector<96x128xf32> to vector<32x128xf32>
    %15 = vector.extract_strided_slice %11 {offsets = [32, 0], sizes = [32, 128], strides = [1, 1]} : vector<96x128xf32> to vector<32x128xf32>
    %16 = vector.extract_strided_slice %11 {offsets = [64, 0], sizes = [32, 128], strides = [1, 1]} : vector<96x128xf32> to vector<32x128xf32>
    %c0_7 = arith.constant 0 : index
    %c0_8 = arith.constant 0 : index
    %c0_9 = arith.constant 0 : index
    %17 = vector.load %arg4[%c0_7, %c0_8, %c0_9] : memref<1x32x128xf32, #tpu.memory_space<vmem>>, vector<1x32x128xf32>
    %18 = vector.shape_cast %17 : vector<1x32x128xf32> to vector<32x128xf32>
    %19 = arith.mulf %15, %18 : vector<32x128xf32>
    %20 = arith.mulf %14, %13 : vector<32x128xf32>
    %21 = arith.addf %19, %20 : vector<32x128xf32>
    %22 = math.tanh %21 : vector<32x128xf32>
    %23 = arith.mulf %16, %22 : vector<32x128xf32>
    %c0_10 = arith.constant 0 : index
    %c0_11 = arith.constant 0 : index
    %c0_12 = arith.constant 0 : index
    %24 = vector.load %arg5[%c0_10, %c0_11, %c0_12] : memref<1x32x128xf32, #tpu.memory_space<vmem>>, vector<1x32x128xf32>
    %25 = vector.shape_cast %24 : vector<1x32x128xf32> to vector<32x128xf32>
    %26 = vector.shape_cast %23 : vector<32x128xf32> to vector<1x32x128xf32>
    tpu.vector_store %arg5[%c0_10, %c0_11, %c0_12], %26 {strides = array<i32>} : memref<1x32x128xf32, #tpu.memory_space<vmem>>, vector<1x32x128xf32>,
    %c0_13 = arith.constant 0 : index
    %c0_14 = arith.constant 0 : index
    %c0_15 = arith.constant 0 : index
    %27 = vector.load %arg6[%c0_13, %c0_14, %c0_15] : memref<1x32x128xf32, #tpu.memory_space<vmem>>, vector<1x32x128xf32>
    %28 = vector.shape_cast %27 : vector<1x32x128xf32> to vector<32x128xf32>
    %29 = vector.shape_cast %21 : vector<32x128xf32> to vector<1x32x128xf32>
    tpu.vector_store %arg6[%c0_13, %c0_14, %c0_15], %29 {strides = array<i32>} : memref<1x32x128xf32, #tpu.memory_space<vmem>>, vector<1x32x128xf32>,
    return
  }
  func.func @transform_0(%arg0: i32, %arg1: i32) -> (i32, i32, i32) {
    %c0_i32 = arith.constant 0 : i32
    %c0_i32_0 = arith.constant 0 : i32
    return %arg0, %c0_i32, %arg1 : i32, i32, i32
  }
  func.func @transform_1(%arg0: i32, %arg1: i32) -> (i32, i32) {
    %c0_i32 = arith.constant 0 : i32
    %c0_i32_0 = arith.constant 0 : i32
    %c0_i32_1 = arith.constant 0 : i32
    return %c0_i32, %c0_i32_0 : i32, i32
  }
  func.func @transform_2(%arg0: i32, %arg1: i32) -> (i32, i32, i32) {
    %c0_i32 = arith.constant 0 : i32
    %c0_i32_0 = arith.constant 0 : i32
    return %arg0, %c0_i32, %arg1 : i32, i32, i32
  }
  func.func @transform_3(%arg0: i32, %arg1: i32) -> (i32, i32, i32) {
    %c0_i32 = arith.constant 0 : i32
    %c0_i32_0 = arith.constant 0 : i32
    return %arg0, %c0_i32, %arg1 : i32, i32, i32
  }
  func.func @transform_4(%arg0: i32, %arg1: i32) -> (i32, i32, i32) {
    %c0_i32 = arith.constant 0 : i32
    %c0_i32_0 = arith.constant 0 : i32
    return %arg0, %c0_i32, %arg1 : i32, i32, i32
  }
}

</mosaic_0001>

<llo_original>
// kernel: tpu_custom_call.1
$region0: #{tpu_custom_call.1}
  #allocation0 [shape = 'u32[]', space=smem, size = 0x4, offset = 0x4, fixed_abs, tag = 'smem constant byte address 0x4 - core index']
  #allocation1 [shape = 'u32[72,128]{1,0:T(1,128)}', space=vmem, size = 0x9000, scoped, tag = 'internal scratch']
  %s0 = inlined_call_operand.hbm [shape: bf16[2,384,256], index: 0, kind: input, shape index: {}]
  %s1 = inlined_call_operand.hbm [shape: bf16[128,384], index: 1, kind: input, shape index: {}]
  %s2 = inlined_call_operand.hbm [shape: f32[2,32,256], index: 2, kind: input, shape index: {}]
  %s3 = inlined_call_operand.hbm [shape: f32[2,32,256], index: 3, kind: output, shape index: {0}]
  %s4 = inlined_call_operand.hbm [shape: f32[2,32,256], index: 4, kind: output, shape index: {1}]
  %5 = xla_tuple %s3, %s4
  %s6 = sld [smem:[#allocation0]]
  $region65: #{tpu_custom_call.1} parent=0
    _
  %s8 = ssub.s32 1, %s6
  %s9 = scalar_select 0, %s8, %s6
  $region1: #{tpu_custom_call.1} parent=0
    #allocation2 [shape = 'u8[196608]{0}', space=vmem, size = 0x30000, scoped, tag = 'input window, operand 0']
    #allocation3 [shape = 's32[2]{0}', space=sflag, size = 0x8, scoped, tag = 'scoped memory for tpu_custom_call.1']
    #allocation4 [shape = 's32[2]{0}', space=sflag, size = 0x8, scoped, tag = 'scoped memory for tpu_custom_call.1']
    #allocation5 [shape = 'u8[98304]{0}', space=vmem, size = 0x18000, scoped, tag = 'input window, operand 1, single buffered']
    #allocation6 [shape = 's32[1]{0}', space=sflag, size = 0x4, scoped, tag = 'scoped memory for tpu_custom_call.1']
    #allocation7 [shape = 'u8[32768]{0}', space=vmem, size = 0x8000, scoped, tag = 'input window, operand 2']
    #allocation8 [shape = 'u8[32768]{0}', space=vmem, size = 0x8000, scoped, tag = 'output window, operand 0']
    #allocation9 [shape = 'u8[32768]{0}', space=vmem, size = 0x8000, scoped, tag = 'output window, operand 1']
    #allocation10 [shape = 's32[2]{0}', space=sflag, size = 0x8, scoped, tag = 'scoped memory for tpu_custom_call.1']
    %10 = vsyncpa [#allocation3], 0
    %s11 = scalar_lea.sflag [#allocation3], 1
    %12 = vsyncpa %s11, 0
    %13 = vsyncpa [#allocation6], 0
    %14 = vsyncpa [#allocation4], 0
    %s15 = scalar_lea.sflag [#allocation4], 1
    %16 = vsyncpa %s15, 0
    %17 = vsyncpa [#allocation10], 0
    %s18 = scalar_lea.sflag [#allocation10], 1
    %19 = vsyncpa %s18, 0
    loop: start=0, step=1, limit=6
    $region2: #{tpu_custom_call.1} parent=1 // loop_pre_header
      _
    $region3: #{tpu_custom_call.1} parent=1 // loop_header
      %s21 = sphi 0, %s25
      %p22 = scmp.ge.s32.totalorder %s21, 6
      %s28 = sphi 0, %s40
      %s29 = sphi 0, %s36
      %s30 = sphi 0, %s28
      %s31 = sphi 0, %s29
      %s32 = sphi 0, %s30
      %s33 = sphi 0, %s31
      %s45 = sphi 0, %s47
      %s48 = sphi 0, %s45
      %s49 = sphi 0, %s48
      %s65 = sphi 0, %s49
      %s69 = sphi 0, %s69
      %s71 = sphi 0, %s69
      %s72 = sphi 0, %s71
      %s86 = sphi 0, %s72
      %s94 = sphi 0, %s96
      %s97 = sphi 0, %s94
      %s98 = sphi 0, %s97
      %s114 = sphi 0, %s98
      %s122 = sphi 0, %s124
      %s125 = sphi 0, %s122
      %s126 = sphi 0, %s125
      %s142 = sphi 0, %s126
      %s150 = sphi 0, %s152
      %s153 = sphi 0, %s150
      %s154 = sphi 0, %s153
      %s170 = sphi 0, %s154
    $region4: #{tpu_custom_call.1} parent=1 // loop_header_branch
      %24 = sbr.rel (%p22) target = $region8
    $region5: #{tpu_custom_call.1} parent=1 // loop_body
      %s26 = ssub.s32 %s21, 1
      %s27 = ssub.s32 %s21, 2
      %s34 = sadd.s32 1, %s29
      %p35 = scmp.ge.s32.totalorder %s34, 2
      %s36 = scalar_select %p35, 0, %s34
      %s37 = sadd.s32 1, %s28
      %s38 = scalar_select %p35, %s37, %s28
      %p39 = scmp.ge.s32.totalorder %s38, 2
      %s40 = scalar_select %p39, 0, %s38
      %s41 = ssub.s32 %s28, %s40
      %s42 = ssub.s32 %s29, %s36
      %s43 = sor.u32 %s41, %s42
      %p44 = scmp.eq.s32.totalorder %s43, 0
      %s46 = sadd.s32 %s45, 1
      %s47 = scalar_select %p44, %s45, %s46
      %p50 = pneg %p44
      %p51 = scmp.eq.s32.totalorder %s21, 3
      %p52 = por %p50, %p51
      %p53 = scmp.ne.s32.totalorder %s45, %s48
      %p54 = scmp.eq.s32.totalorder %s21, 0
      %p55 = por %p53, %p54
      %p56 = scmp.ne.s32.totalorder %s45, %s48
      %p57 = scmp.eq.s32.totalorder %s26, 3
      %p58 = por %p56, %p57
      %p59 = scmp.ne.s32.totalorder %s48, %s49
      %p60 = scmp.eq.s32.totalorder %s26, 0
      %p61 = por %p59, %p60
      %p62 = scmp.ne.s32.totalorder %s48, %s49
      %p63 = scmp.eq.s32.totalorder %s27, 3
      %p64 = por %p62, %p63
      %p66 = scmp.ne.s32.totalorder %s49, %s65
      %p67 = scmp.eq.s32.totalorder %s27, 0
      %p68 = por %p66, %p67
      %s70 = sadd.s32 %s69, 1
      %p73 = scmp.eq.s32.totalorder %s21, 3
      %p74 = scmp.ne.s32.totalorder %s69, %s71
      %p75 = scmp.eq.s32.totalorder %s21, 0
      %p76 = por %p74, %p75
      %p77 = scmp.ne.s32.totalorder %s69, %s71
      %p78 = scmp.eq.s32.totalorder %s26, 3
      %p79 = por %p77, %p78
      %p80 = scmp.ne.s32.totalorder %s71, %s72
      %p81 = scmp.eq.s32.totalorder %s26, 0
      %p82 = por %p80, %p81
      %p83 = scmp.ne.s32.totalorder %s71, %s72
      %p84 = scmp.eq.s32.totalorder %s27, 3
      %p85 = por %p83, %p84
      %p87 = scmp.ne.s32.totalorder %s72, %s86
      %p88 = scmp.eq.s32.totalorder %s27, 0
      %p89 = por %p87, %p88
      %s90 = ssub.s32 %s28, %s40
      %s91 = ssub.s32 %s29, %s36
      %s92 = sor.u32 %s90, %s91
      %p93 = scmp.eq.s32.totalorder %s92, 0
      %s95 = sadd.s32 %s94, 1
      %s96 = scalar_select %p93, %s94, %s95
      %p99 = pneg %p93
      %p100 = scmp.eq.s32.totalorder %s21, 3
      %p101 = por %p99, %p100
      %p102 = scmp.ne.s32.totalorder %s94, %s97
      %p103 = scmp.eq.s32.totalorder %s21, 0
      %p104 = por %p102, %p103
      %p105 = scmp.ne.s32.totalorder %s94, %s97
      %p106 = scmp.eq.s32.totalorder %s26, 3
      %p107 = por %p105, %p106
      %p108 = scmp.ne.s32.totalorder %s97, %s98
      %p109 = scmp.eq.s32.totalorder %s26, 0
      %p110 = por %p108, %p109
      %p111 = scmp.ne.s32.totalorder %s97, %s98
      %p112 = scmp.eq.s32.totalorder %s27, 3
      %p113 = por %p111, %p112
      %p115 = scmp.ne.s32.totalorder %s98, %s114
      %p116 = scmp.eq.s32.totalorder %s27, 0
      %p117 = por %p115, %p116
      %s118 = ssub.s32 %s28, %s40
      %s119 = ssub.s32 %s29, %s36
      %s120 = sor.u32 %s118, %s119
      %p121 = scmp.eq.s32.totalorder %s120, 0
      %s123 = sadd.s32 %s122, 1
      %s124 = scalar_select %p121, %s122, %s123
      %p127 = pneg %p121
      %p128 = scmp.eq.s32.totalorder %s21, 3
      %p129 = por %p127, %p128
      %p130 = scmp.ne.s32.totalorder %s122, %s125
      %p131 = scmp.eq.s32.totalorder %s21, 0
      %p132 = por %p130, %p131
      %p133 = scmp.ne.s32.totalorder %s122, %s125
      %p134 = scmp.eq.s32.totalorder %s26, 3
      %p135 = por %p133, %p134
      %p136 = scmp.ne.s32.totalorder %s125, %s126
      %p137 = scmp.eq.s32.totalorder %s26, 0
      %p138 = por %p136, %p137
      %p139 = scmp.ne.s32.totalorder %s125, %s126
      %p140 = scmp.eq.s32.totalorder %s27, 3
      %p141 = por %p139, %p140
      %p143 = scmp.ne.s32.totalorder %s126, %s142
      %p144 = scmp.eq.s32.totalorder %s27, 0
      %p145 = por %p143, %p144
      %s146 = ssub.s32 %s28, %s40
      %s147 = ssub.s32 %s29, %s36
      %s148 = sor.u32 %s146, %s147
      %p149 = scmp.eq.s32.totalorder %s148, 0
      %s151 = sadd.s32 %s150, 1
      %s152 = scalar_select %p149, %s150, %s151
      %p155 = pneg %p149
      %p156 = scmp.eq.s32.totalorder %s21, 3
      %p157 = por %p155, %p156
      %p158 = scmp.ne.s32.totalorder %s150, %s153
      %p159 = scmp.eq.s32.totalorder %s21, 0
      %p160 = por %p158, %p159
      %p161 = scmp.ne.s32.totalorder %s150, %s153
      %p162 = scmp.eq.s32.totalorder %s26, 3
      %p163 = por %p161, %p162
      %p164 = scmp.ne.s32.totalorder %s153, %s154
      %p165 = scmp.eq.s32.totalorder %s26, 0
      %p166 = por %p164, %p165
      %p167 = scmp.ne.s32.totalorder %s153, %s154
      %p168 = scmp.eq.s32.totalorder %s27, 3
      %p169 = por %p167, %p168
      %p171 = scmp.ne.s32.totalorder %s154, %s170
      %p172 = scmp.eq.s32.totalorder %s27, 0
      %p173 = por %p171, %p172
      %p174 = scmp.le.s32.totalorder 1, %s21
      %p175 = scmp.lt.s32.totalorder %s21, 5
      %p176 = pnand %p174, %p175
      %p177 = pneg %p176
      // Predicated region
      $region9: #{tpu_custom_call.1} parent=5 // pred_check
        _
      $region10: #{tpu_custom_call.1} parent=5 // pred_check_branch
        %179 = sbr.rel (%p176) target = $region12
      $region11: #{tpu_custom_call.1} parent=5 // pred_region
        %s180 = ssub.s32 %s21, 1
        // Predicated region
        $region13: #{tpu_custom_call.1} parent=11 // pred_check
          %p181 = pneg %p82
        $region14: #{tpu_custom_call.1} parent=11 // pred_check_branch
          %183 = sbr.rel (%p181) target = $region16
        $region15: #{tpu_custom_call.1} parent=11 // pred_region
          %185 = vsyncadd [#allocation6], 0
          %s186 = sshll.u32 %s1, 4
          %s187 = int_to_ptr.hbm [resolvable:$true] %s186
          %s188 = sshll.u32 [#allocation5], 4
          %s189 = int_to_ptr.vmem [resolvable:$true] %s188
          %194 = dma.hbm_to_vmem [thread:$0]  %s187, 3072, %s189, [#allocation6], 192, 192, 12
        $region16: #{tpu_custom_call.1} parent=11 // pred_fallthru
          _
      $region12: #{tpu_custom_call.1} parent=5 // pred_fallthru
        _
      %p195 = scmp.lt.s32.totalorder %s21, 4
      // Predicated region
      $region17: #{tpu_custom_call.1} parent=5 // pred_check
        %p196 = pneg %p195
      $region18: #{tpu_custom_call.1} parent=5 // pred_check_branch
        %198 = sbr.rel (%p196) target = $region20
      $region19: #{tpu_custom_call.1} parent=5 // pred_region
        // Predicated region
        $region21: #{tpu_custom_call.1} parent=19 // pred_check
          %p199 = pneg %p55
        $region22: #{tpu_custom_call.1} parent=19 // pred_check_branch
          %201 = sbr.rel (%p199) target = $region24
        $region23: #{tpu_custom_call.1} parent=19 // pred_region
          %s202 = sand.u32 %s21, 1
          %s203 = scalar_lea.sflag [#allocation3], %s202
          %s204 = sand.u32 %s45, 1
          %s205 = smul.addr %s204, 192
          %s206 = scalar_lea.vmem [#allocation2], %s205
          %208 = vsyncadd %s203, 0
          %s209 = smul.addr %s28, 96
          %s210 = sadd.s32 %s29, %s209
          %s211 = smul.addr %s210, 4
          %s212 = scalar_lea.hbm %s0, %s211
          %s213 = sshll.u32 %s212, 4
          %s214 = int_to_ptr.hbm [resolvable:$true] %s213
          %s215 = sshll.u32 %s206, 4
          %s216 = int_to_ptr.vmem [resolvable:$true] %s215
          %221 = dma.hbm_to_vmem [thread:$0]  %s214, 3072, %s216, %s203, 128, 64, 4
        $region24: #{tpu_custom_call.1} parent=19 // pred_fallthru
          _
        // Predicated region
        $region25: #{tpu_custom_call.1} parent=19 // pred_check
          %p222 = pneg %p104
        $region26: #{tpu_custom_call.1} parent=19 // pred_check_branch
          %224 = sbr.rel (%p222) target = $region28
        $region27: #{tpu_custom_call.1} parent=19 // pred_region
          %s225 = sand.u32 %s21, 1
          %s226 = scalar_lea.sflag [#allocation3], %s225
          %s227 = sand.u32 %s94, 1
          %s228 = smul.addr %s227, 32
          %s229 = scalar_lea.vmem [#allocation7], %s228
          %231 = vsyncadd %s226, 0
          %s232 = smul.addr %s28, 8
          %s233 = sadd.s32 %s29, %s232
          %s234 = smul.addr %s233, 8
          %s235 = scalar_lea.hbm %s2, %s234
          %s236 = sshll.u32 %s235, 4
          %s237 = int_to_ptr.hbm [resolvable:$true] %s236
          %s238 = sshll.u32 %s229, 4
          %s239 = int_to_ptr.vmem [resolvable:$true] %s238
          %244 = dma.hbm_to_vmem [thread:$0]  %s237, 512, %s239, %s226, 256, 128, 8
        $region28: #{tpu_custom_call.1} parent=19 // pred_fallthru
          _
      $region20: #{tpu_custom_call.1} parent=5 // pred_fallthru
        _
      %p245 = scmp.le.s32.totalorder 1, %s21
      %p246 = scmp.lt.s32.totalorder %s21, 5
      %p247 = pnand %p245, %p246
      %p248 = pneg %p247
      // Predicated region
      $region29: #{tpu_custom_call.1} parent=5 // pred_check
        _
      $region30: #{tpu_custom_call.1} parent=5 // pred_check_branch
        %250 = sbr.rel (%p247) target = $region32
      $region31: #{tpu_custom_call.1} parent=5 // pred_region
        %s251 = ssub.s32 %s21, 1
        %s252 = sand.u32 %s26, 1
        %s253 = scalar_lea.sflag [#allocation3], %s252
        %s254 = sand.u32 %s48, 1
        %s255 = smul.addr %s254, 192
        %s256 = scalar_lea.vmem [#allocation2], %s255
        // Predicated region
        $region33: #{tpu_custom_call.1} parent=31 // pred_check
          %p257 = pneg %p61
        $region34: #{tpu_custom_call.1} parent=31 // pred_check_branch
          %259 = sbr.rel (%p257) target = $region36
        $region35: #{tpu_custom_call.1} parent=31 // pred_region
          %261 = dma.done %s253, 3072
        $region36: #{tpu_custom_call.1} parent=31 // pred_fallthru
          _
        // Predicated region
        $region37: #{tpu_custom_call.1} parent=31 // pred_check
          %p262 = pneg %p82
        $region38: #{tpu_custom_call.1} parent=31 // pred_check_branch
          %264 = sbr.rel (%p262) target = $region40
        $region39: #{tpu_custom_call.1} parent=31 // pred_region
          %266 = dma.done [#allocation6], 3072
        $region40: #{tpu_custom_call.1} parent=31 // pred_fallthru
          _
        %s267 = sand.u32 %s26, 1
        %s268 = scalar_lea.sflag [#allocation3], %s267
        %s269 = sand.u32 %s97, 1
        %s270 = smul.addr %s269, 32
        %s271 = scalar_lea.vmem [#allocation7], %s270
        // Predicated region
        $region41: #{tpu_custom_call.1} parent=31 // pred_check
          %p272 = pneg %p110
        $region42: #{tpu_custom_call.1} parent=31 // pred_check_branch
          %274 = sbr.rel (%p272) target = $region44
        $region43: #{tpu_custom_call.1} parent=31 // pred_region
          %276 = dma.done %s268, 512
        $region44: #{tpu_custom_call.1} parent=31 // pred_fallthru
          _
        %s277 = sand.u32 %s26, 1
        %s278 = scalar_lea.sflag [#allocation3], %s277
        %s279 = sand.u32 %s48, 1
        %s280 = smul.addr %s279, 192
        %s281 = scalar_lea.vmem [#allocation2], %s280
        %p282 = pneg %p61
        %p283 = pneg %p58
        %p284 = pneg %p82
        %p285 = pneg %p79
        %s286 = sand.u32 %s26, 1
        %s287 = scalar_lea.sflag [#allocation3], %s286
        %s288 = sand.u32 %s97, 1
        %s289 = smul.addr %s288, 32
        %s290 = scalar_lea.vmem [#allocation7], %s289
        %p291 = pneg %p110
        %p292 = pneg %p107
        %p293 = pneg %p138
        %p294 = pneg %p135
        %s295 = sand.u32 %s125, 1
        %s296 = scalar_lea.sflag [#allocation4], %s295
        %s297 = sand.u32 %s125, 1
        %s298 = smul.addr %s297, 32
        %s299 = scalar_lea.vmem [#allocation8], %s298
        %p300 = pneg %p166
        %p301 = pneg %p163
        %s302 = sand.u32 %s153, 1
        %s303 = scalar_lea.sflag [#allocation10], %s302
        %s304 = sand.u32 %s153, 1
        %s305 = smul.addr %s304, 32
        %s306 = scalar_lea.vmem [#allocation9], %s305
        %v307 = vld [vmem:[#allocation5] sm:$0xff]
        %v308 = vld [vmem:[#allocation5 + $0x8] sm:$0xf]
        %v309 = vld [vmem:[#allocation5 + $0xc] sm:$0xff]
        %v310 = vld [vmem:[#allocation5 + $0x14] sm:$0xf]
        %v311 = vld [vmem:[#allocation5 + $0x18] sm:$0xff]
        %v312 = vld [vmem:[#allocation5 + $0x20] sm:$0xf]
        %v313 = vld [vmem:[#allocation5 + $0x24] sm:$0xff]
        %v314 = vld [vmem:[#allocation5 + $0x2c] sm:$0xf]
        %v315 = vld [vmem:[#allocation5 + $0x30] sm:$0xff]
        %v316 = vld [vmem:[#allocation5 + $0x38] sm:$0xf]
        %v317 = vld [vmem:[#allocation5 + $0x3c] sm:$0xff]
        %v318 = vld [vmem:[#allocation5 + $0x44] sm:$0xf]
        %v319 = vld [vmem:[#allocation5 + $0x48] sm:$0xff]
        %v320 = vld [vmem:[#allocation5 + $0x50] sm:$0xf]
        %v321 = vld [vmem:[#allocation5 + $0x54] sm:$0xff]
        %v322 = vld [vmem:[#allocation5 + $0x5c] sm:$0xf]
        %v323 = vld [vmem:[#allocation5 + $0x60] sm:$0xff]
        %v324 = vld [vmem:[#allocation5 + $0x68] sm:$0xf]
        %v325 = vld [vmem:[#allocation5 + $0x6c] sm:$0xff]
        %v326 = vld [vmem:[#allocation5 + $0x74] sm:$0xf]
        %v327 = vld [vmem:[#allocation5 + $0x78] sm:$0xff]
        %v328 = vld [vmem:[#allocation5 + $0x80] sm:$0xf]
        %v329 = vld [vmem:[#allocation5 + $0x84] sm:$0xff]
        %v330 = vld [vmem:[#allocation5 + $0x8c] sm:$0xf]
        %v331 = vld [vmem:[#allocation5 + $0x90] sm:$0xff]
        %v332 = vld [vmem:[#allocation5 + $0x98] sm:$0xf]
        %v333 = vld [vmem:[#allocation5 + $0x9c] sm:$0xff]
        %v334 = vld [vmem:[#allocation5 + $0xa4] sm:$0xf]
        %v335 = vld [vmem:[#allocation5 + $0xa8] sm:$0xff]
        %v336 = vld [vmem:[#allocation5 + $0xb0] sm:$0xf]
        %v337 = vld [vmem:[#allocation5 + $0xb4] sm:$0xff]
        %v338 = vld [vmem:[#allocation5 + $0xbc] sm:$0xf]
        %v339 = vld [vmem:[%s256] sm:$0xf]
        %v340 = vld [vmem:[%s256 + $0x4] sm:$0xf]
        %v341 = vld [vmem:[%s256 + $0x8] sm:$0xf]
        %v342 = vld [vmem:[%s256 + $0xc] sm:$0xf]
        %v343 = vld [vmem:[%s256 + $0x10] sm:$0xf]
        %v344 = vld [vmem:[%s256 + $0x14] sm:$0xf]
        %v345 = vld [vmem:[%s256 + $0x18] sm:$0xf]
        %v346 = vld [vmem:[%s256 + $0x1c] sm:$0xf]
        %v347 = vld [vmem:[%s256 + $0x20] sm:$0xf]
        %v348 = vld [vmem:[%s256 + $0x24] sm:$0xf]
        %v349 = vld [vmem:[%s256 + $0x28] sm:$0xf]
        %v350 = vld [vmem:[%s256 + $0x2c] sm:$0xf]
        %v351 = vld [vmem:[%s256 + $0x30] sm:$0xf]
        %v352 = vld [vmem:[%s256 + $0x34] sm:$0xf]
        %v353 = vld [vmem:[%s256 + $0x38] sm:$0xf]
        %v354 = vld [vmem:[%s256 + $0x3c] sm:$0xf]
        %v355 = vld [vmem:[%s256 + $0x40] sm:$0xf]
        %v356 = vld [vmem:[%s256 + $0x44] sm:$0xf]
        %v357 = vld [vmem:[%s256 + $0x48] sm:$0xf]
        %v358 = vld [vmem:[%s256 + $0x4c] sm:$0xf]
        %v359 = vld [vmem:[%s256 + $0x50] sm:$0xf]
        %v360 = vld [vmem:[%s256 + $0x54] sm:$0xf]
        %v361 = vld [vmem:[%s256 + $0x58] sm:$0xf]
        %v362 = vld [vmem:[%s256 + $0x5c] sm:$0xf]
        %v363 = vld [vmem:[%s256 + $0x60] sm:$0xf]
        %v364 = vld [vmem:[%s256 + $0x64] sm:$0xf]
        %v365 = vld [vmem:[%s256 + $0x68] sm:$0xf]
        %v366 = vld [vmem:[%s256 + $0x6c] sm:$0xf]
        %v367 = vld [vmem:[%s256 + $0x70] sm:$0xf]
        %v368 = vld [vmem:[%s256 + $0x74] sm:$0xf]
        %v369 = vld [vmem:[%s256 + $0x78] sm:$0xf]
        %v370 = vld [vmem:[%s256 + $0x7c] sm:$0xf]
        %v371 = vld [vmem:[%s256 + $0x80] sm:$0xf]
        %v372 = vld [vmem:[%s256 + $0x84] sm:$0xf]
        %v373 = vld [vmem:[%s256 + $0x88] sm:$0xf]
        %v374 = vld [vmem:[%s256 + $0x8c] sm:$0xf]
        %v375 = vld [vmem:[%s256 + $0x90] sm:$0xf]
        %v376 = vld [vmem:[%s256 + $0x94] sm:$0xf]
        %v377 = vld [vmem:[%s256 + $0x98] sm:$0xf]
        %v378 = vld [vmem:[%s256 + $0x9c] sm:$0xf]
        %v379 = vld [vmem:[%s256 + $0xa0] sm:$0xf]
        %v380 = vld [vmem:[%s256 + $0xa4] sm:$0xf]
        %v381 = vld [vmem:[%s256 + $0xa8] sm:$0xf]
        %v382 = vld [vmem:[%s256 + $0xac] sm:$0xf]
        %v383 = vld [vmem:[%s256 + $0xb0] sm:$0xf]
        %v384 = vld [vmem:[%s256 + $0xb4] sm:$0xf]
        %v385 = vld [vmem:[%s256 + $0xb8] sm:$0xf]
        %v386 = vld [vmem:[%s256 + $0xbc] sm:$0xf]
        %v419 = vunpack.c.l.b16 %v307
        %v420 = vunpack.c.h.b16 %v307
        %v421 = vunpack.c.l.b16 %v308
        %v422 = vunpack.c.l.b16 %v309
        %v423 = vunpack.c.h.b16 %v309
        %v424 = vunpack.c.l.b16 %v310
        %v425 = vunpack.c.l.b16 %v311
        %v426 = vunpack.c.h.b16 %v311
        %v427 = vunpack.c.l.b16 %v312
        %v428 = vunpack.c.l.b16 %v313
        %v429 = vunpack.c.h.b16 %v313
        %v430 = vunpack.c.l.b16 %v314
        %v431 = vunpack.c.l.b16 %v315
        %v432 = vunpack.c.h.b16 %v315
        %v433 = vunpack.c.l.b16 %v316
        %v434 = vunpack.c.l.b16 %v317
        %v435 = vunpack.c.h.b16 %v317
        %v436 = vunpack.c.l.b16 %v318
        %v437 = vunpack.c.l.b16 %v319
        %v438 = vunpack.c.h.b16 %v319
        %v439 = vunpack.c.l.b16 %v320
        %v440 = vunpack.c.l.b16 %v321
        %v441 = vunpack.c.h.b16 %v321
        %v442 = vunpack.c.l.b16 %v322
        %v443 = vunpack.c.l.b16 %v323
        %v444 = vunpack.c.h.b16 %v323
        %v445 = vunpack.c.l.b16 %v324
        %v446 = vunpack.c.l.b16 %v325
        %v447 = vunpack.c.h.b16 %v325
        %v448 = vunpack.c.l.b16 %v326
        %v449 = vunpack.c.l.b16 %v327
        %v450 = vunpack.c.h.b16 %v327
        %v451 = vunpack.c.l.b16 %v328
        %v452 = vunpack.c.l.b16 %v329
        %v453 = vunpack.c.h.b16 %v329
        %v454 = vunpack.c.l.b16 %v330
        %v455 = vunpack.c.l.b16 %v331
        %v456 = vunpack.c.h.b16 %v331
        %v457 = vunpack.c.l.b16 %v332
        %v458 = vunpack.c.l.b16 %v333
        %v459 = vunpack.c.h.b16 %v333
        %v460 = vunpack.c.l.b16 %v334
        %v461 = vunpack.c.l.b16 %v335
        %v462 = vunpack.c.h.b16 %v335
        %v463 = vunpack.c.l.b16 %v336
        %v464 = vunpack.c.l.b16 %v337
        %v465 = vunpack.c.h.b16 %v337
        %v466 = vunpack.c.l.b16 %v338
        %v467 = vpack.c.b16 %v422, %v419
        %v468 = vpack.c.b16 %v423, %v420
        %v469 = vpack.c.b16 %v424, %v421
        %v470 = vpack.c.b16 %v428, %v425
        %v471 = vpack.c.b16 %v429, %v426
        %v472 = vpack.c.b16 %v430, %v427
        %v473 = vpack.c.b16 %v434, %v431
        %v474 = vpack.c.b16 %v435, %v432
        %v475 = vpack.c.b16 %v436, %v433
        %v476 = vpack.c.b16 %v440, %v437
        %v477 = vpack.c.b16 %v441, %v438
        %v478 = vpack.c.b16 %v442, %v439
        %v479 = vpack.c.b16 %v446, %v443
        %v480 = vpack.c.b16 %v447, %v444
        %v481 = vpack.c.b16 %v448, %v445
        %v482 = vpack.c.b16 %v452, %v449
        %v483 = vpack.c.b16 %v453, %v450
        %v484 = vpack.c.b16 %v454, %v451
        %v485 = vpack.c.b16 %v458, %v455
        %v486 = vpack.c.b16 %v459, %v456
        %v487 = vpack.c.b16 %v460, %v457
        %v488 = vpack.c.b16 %v464, %v461
        %v489 = vpack.c.b16 %v465, %v462
        %v490 = vpack.c.b16 %v466, %v463
        %v563 = vunpack.c.l.b16 %v339
        %v564 = vunpack.c.l.b16 %v340
        %v565 = vunpack.c.l.b16 %v341
        %v566 = vunpack.c.l.b16 %v342
        %v567 = vunpack.c.l.b16 %v343
        %v568 = vunpack.c.l.b16 %v344
        %v569 = vunpack.c.l.b16 %v345
        %v570 = vunpack.c.l.b16 %v346
        %v571 = vunpack.c.l.b16 %v347
        %v572 = vunpack.c.l.b16 %v348
        %v573 = vunpack.c.l.b16 %v349
        %v574 = vunpack.c.l.b16 %v350
        %v575 = vunpack.c.l.b16 %v351
        %v576 = vunpack.c.l.b16 %v352
        %v577 = vunpack.c.l.b16 %v353
        %v578 = vunpack.c.l.b16 %v354
        %v579 = vunpack.c.l.b16 %v355
        %v580 = vunpack.c.l.b16 %v356
        %v581 = vunpack.c.l.b16 %v357
        %v582 = vunpack.c.l.b16 %v358
        %v583 = vunpack.c.l.b16 %v359
        %v584 = vunpack.c.l.b16 %v360
        %v585 = vunpack.c.l.b16 %v361
        %v586 = vunpack.c.l.b16 %v362
        %v587 = vunpack.c.l.b16 %v363
        %v588 = vunpack.c.l.b16 %v364
        %v589 = vunpack.c.l.b16 %v365
        %v590 = vunpack.c.l.b16 %v366
        %v591 = vunpack.c.l.b16 %v367
        %v592 = vunpack.c.l.b16 %v368
        %v593 = vunpack.c.l.b16 %v369
        %v594 = vunpack.c.l.b16 %v370
        %v595 = vunpack.c.l.b16 %v371
        %v596 = vunpack.c.l.b16 %v372
        %v597 = vunpack.c.l.b16 %v373
        %v598 = vunpack.c.l.b16 %v374
        %v599 = vunpack.c.l.b16 %v375
        %v600 = vunpack.c.l.b16 %v376
        %v601 = vunpack.c.l.b16 %v377
        %v602 = vunpack.c.l.b16 %v378
        %v603 = vunpack.c.l.b16 %v379
        %v604 = vunpack.c.l.b16 %v380
        %v605 = vunpack.c.l.b16 %v381
        %v606 = vunpack.c.l.b16 %v382
        %v607 = vunpack.c.l.b16 %v383
        %v608 = vunpack.c.l.b16 %v384
        %v609 = vunpack.c.l.b16 %v385
        %v610 = vunpack.c.l.b16 %v386
        %v611 = vpack.c.b16 %v564, %v563
        %v612 = vpack.c.b16 %v566, %v565
        %v613 = vpack.c.b16 %v568, %v567
        %v614 = vpack.c.b16 %v570, %v569
        %v615 = vpack.c.b16 %v572, %v571
        %v616 = vpack.c.b16 %v574, %v573
        %v617 = vpack.c.b16 %v576, %v575
        %v618 = vpack.c.b16 %v578, %v577
        %v619 = vpack.c.b16 %v580, %v579
        %v620 = vpack.c.b16 %v582, %v581
        %v621 = vpack.c.b16 %v584, %v583
        %v622 = vpack.c.b16 %v586, %v585
        %v623 = vpack.c.b16 %v588, %v587
        %v624 = vpack.c.b16 %v590, %v589
        %v625 = vpack.c.b16 %v592, %v591
        %v626 = vpack.c.b16 %v594, %v593
        %v627 = vpack.c.b16 %v596, %v595
        %v628 = vpack.c.b16 %v598, %v597
        %v629 = vpack.c.b16 %v600, %v599
        %v630 = vpack.c.b16 %v602, %v601
        %v631 = vpack.c.b16 %v604, %v603
        %v632 = vpack.c.b16 %v606, %v605
        %v633 = vpack.c.b16 %v608, %v607
        %v634 = vpack.c.b16 %v610, %v609
        %659 = vmatpush.bf16.msra.mxu0 %v618
        %660 = vmatpush.bf16.msra.mxu0 %v617
        %661 = vmatpush.bf16.msra.mxu0 %v616
        %662 = vmatpush.bf16.msra.mxu0 %v615
        %663 = vmatpush.bf16.msra.mxu0 %v614
        %664 = vmatpush.bf16.msra.mxu0 %v613
        %665 = vmatpush.bf16.msra.mxu0 %v612
        %666 = vmatpush.bf16.msra.mxu0 %v611
        %667 = vmatmul.bf16.gmra.mxu0 %v467
        %v668 = vpop.f32.mrf.mxu0
        %v669 = vadd.f32 0.0, %v668
        %v670 = vpop.f32.mrf.mxu0
        %v671 = vadd.f32 0.0, %v670
        %672 = vmatmul.bf16.gmra.mxu0 %v470
        %v673 = vpop.f32.mrf.mxu0
        %v674 = vadd.f32 0.0, %v673
        %v675 = vpop.f32.mrf.mxu0
        %v676 = vadd.f32 0.0, %v675
        %677 = vmatmul.bf16.gmra.mxu0 %v473
        %v678 = vpop.f32.mrf.mxu0
        %v679 = vadd.f32 0.0, %v678
        %v680 = vpop.f32.mrf.mxu0
        %v681 = vadd.f32 0.0, %v680
        %682 = vmatmul.bf16.gmra.mxu0 %v476
        %v683 = vpop.f32.mrf.mxu0
        %v684 = vadd.f32 0.0, %v683
        %v685 = vpop.f32.mrf.mxu0
        %v686 = vadd.f32 0.0, %v685
        %687 = vmatmul.bf16.gmra.mxu0 %v479
        %v688 = vpop.f32.mrf.mxu0
        %v689 = vadd.f32 0.0, %v688
        %v690 = vpop.f32.mrf.mxu0
        %v691 = vadd.f32 0.0, %v690
        %692 = vmatmul.bf16.gmra.mxu0 %v482
        %v693 = vpop.f32.mrf.mxu0
        %v694 = vadd.f32 0.0, %v693
        %v695 = vpop.f32.mrf.mxu0
        %v696 = vadd.f32 0.0, %v695
        %697 = vmatmul.bf16.gmra.mxu0 %v485
        %v698 = vpop.f32.mrf.mxu0
        %v699 = vadd.f32 0.0, %v698
        %v700 = vpop.f32.mrf.mxu0
        %v701 = vadd.f32 0.0, %v700
        %702 = vmatmul.bf16.gmra.mxu0 %v488
        %v703 = vpop.f32.mrf.mxu0
        %v704 = vadd.f32 0.0, %v703
        %v705 = vpop.f32.mrf.mxu0
        %v706 = vadd.f32 0.0, %v705
        %707 = vdwg.mxu0
        %708 = vmatpush.bf16.msra.mxu0 %v626
        %709 = vmatpush.bf16.msra.mxu0 %v625
        %710 = vmatpush.bf16.msra.mxu0 %v624
        %711 = vmatpush.bf16.msra.mxu0 %v623
        %712 = vmatpush.bf16.msra.mxu0 %v622
        %713 = vmatpush.bf16.msra.mxu0 %v621
        %714 = vmatpush.bf16.msra.mxu0 %v620
        %715 = vmatpush.bf16.msra.mxu0 %v619
        %716 = vmatmul.bf16.gmra.mxu0 %v468
        %v717 = vpop.f32.mrf.mxu0
        %v718 = vadd.f32 %v669, %v717
        %v719 = vpop.f32.mrf.mxu0
        %v720 = vadd.f32 %v671, %v719
        %721 = vmatmul.bf16.gmra.mxu0 %v471
        %v722 = vpop.f32.mrf.mxu0
        %v723 = vadd.f32 %v674, %v722
        %v724 = vpop.f32.mrf.mxu0
        %v725 = vadd.f32 %v676, %v724
        %726 = vmatmul.bf16.gmra.mxu0 %v474
        %v727 = vpop.f32.mrf.mxu0
        %v728 = vadd.f32 %v679, %v727
        %v729 = vpop.f32.mrf.mxu0
        %v730 = vadd.f32 %v681, %v729
        %731 = vmatmul.bf16.gmra.mxu0 %v477
        %v732 = vpop.f32.mrf.mxu0
        %v733 = vadd.f32 %v684, %v732
        %v734 = vpop.f32.mrf.mxu0
        %v735 = vadd.f32 %v686, %v734
        %736 = vmatmul.bf16.gmra.mxu0 %v480
        %v737 = vpop.f32.mrf.mxu0
        %v738 = vadd.f32 %v689, %v737
        %v739 = vpop.f32.mrf.mxu0
        %v740 = vadd.f32 %v691, %v739
        %741 = vmatmul.bf16.gmra.mxu0 %v483
        %v742 = vpop.f32.mrf.mxu0
        %v743 = vadd.f32 %v694, %v742
        %v744 = vpop.f32.mrf.mxu0
        %v745 = vadd.f32 %v696, %v744
        %746 = vmatmul.bf16.gmra.mxu0 %v486
        %v747 = vpop.f32.mrf.mxu0
        %v748 = vadd.f32 %v699, %v747
        %v749 = vpop.f32.mrf.mxu0
        %v750 = vadd.f32 %v701, %v749
        %751 = vmatmul.bf16.gmra.mxu0 %v489
        %v752 = vpop.f32.mrf.mxu0
        %v753 = vadd.f32 %v704, %v752
        %v754 = vpop.f32.mrf.mxu0
        %v755 = vadd.f32 %v706, %v754
        %756 = vdwg.mxu0
        %757 = vmatpush.bf16.msra.mxu0 %v634
        %758 = vmatpush.bf16.msra.mxu0 %v633
        %759 = vmatpush.bf16.msra.mxu0 %v632
        %760 = vmatpush.bf16.msra.mxu0 %v631
        %761 = vmatpush.bf16.msra.mxu0 %v630
        %762 = vmatpush.bf16.msra.mxu0 %v629
        %763 = vmatpush.bf16.msra.mxu0 %v628
        %764 = vmatpush.bf16.msra.mxu0 %v627
        %765 = vmatmul.bf16.gmra.mxu0 %v469
        %v766 = vpop.f32.mrf.mxu0
        %v767 = vadd.f32 %v718, %v766
        %v768 = vpop.f32.mrf.mxu0
        %v769 = vadd.f32 %v720, %v768
        %770 = vmatmul.bf16.gmra.mxu0 %v472
        %v771 = vpop.f32.mrf.mxu0
        %v772 = vadd.f32 %v723, %v771
        %v773 = vpop.f32.mrf.mxu0
        %v774 = vadd.f32 %v725, %v773
        %775 = vmatmul.bf16.gmra.mxu0 %v475
        %v776 = vpop.f32.mrf.mxu0
        %v777 = vadd.f32 %v728, %v776
        %v778 = vpop.f32.mrf.mxu0
        %v779 = vadd.f32 %v730, %v778
        %780 = vmatmul.bf16.gmra.mxu0 %v478
        %v781 = vpop.f32.mrf.mxu0
        %v782 = vadd.f32 %v733, %v781
        %v783 = vpop.f32.mrf.mxu0
        %v784 = vadd.f32 %v735, %v783
        %785 = vmatmul.bf16.gmra.mxu0 %v481
        %v786 = vpop.f32.mrf.mxu0
        %v787 = vadd.f32 %v738, %v786
        %v788 = vpop.f32.mrf.mxu0
        %v789 = vadd.f32 %v740, %v788
        %790 = vmatmul.bf16.gmra.mxu0 %v484
        %v791 = vpop.f32.mrf.mxu0
        %v792 = vadd.f32 %v743, %v791
        %v793 = vpop.f32.mrf.mxu0
        %v794 = vadd.f32 %v745, %v793
        %795 = vmatmul.bf16.gmra.mxu0 %v487
        %v796 = vpop.f32.mrf.mxu0
        %v797 = vadd.f32 %v748, %v796
        %v798 = vpop.f32.mrf.mxu0
        %v799 = vadd.f32 %v750, %v798
        %800 = vmatmul.bf16.gmra.mxu0 %v490
        %v801 = vpop.f32.mrf.mxu0
        %v802 = vadd.f32 %v753, %v801
        %v803 = vpop.f32.mrf.mxu0
        %v804 = vadd.f32 %v755, %v803
        %805 = vdwg.mxu0
        %v806 = vmul.f32 %v767, 0.5
        %v807 = vmul.f32 %v769, 0.5
        %v808 = vmul.f32 %v772, 0.5
        %v809 = vmul.f32 %v774, 0.5
        %v810 = vmul.f32 %v777, 0.5
        %v811 = vmul.f32 %v779, 0.5
        %v812 = vmul.f32 %v782, 0.5
        %v813 = vmul.f32 %v784, 0.5
        %v814 = vmul.f32 %v787, 0.5
        %v815 = vmul.f32 %v789, 0.5
        %v816 = vmul.f32 %v792, 0.5
        %v817 = vmul.f32 %v794, 0.5
        %v818 = vtanh.pop %v806
        %v819 = vtanh.pop %v807
        %v820 = vtanh.pop %v808
        %v821 = vtanh.pop %v809
        %v822 = vtanh.pop %v810
        %v823 = vtanh.pop %v811
        %v824 = vtanh.pop %v812
        %v825 = vtanh.pop %v813
        %v826 = vtanh.pop %v814
        %v827 = vtanh.pop %v815
        %v828 = vtanh.pop %v816
        %v829 = vtanh.pop %v817
        %v830 = vadd.f32 %v818, 1.0
        %v831 = vadd.f32 %v819, 1.0
        %v832 = vadd.f32 %v820, 1.0
        %v833 = vadd.f32 %v821, 1.0
        %v834 = vadd.f32 %v822, 1.0
        %v835 = vadd.f32 %v823, 1.0
        %v836 = vadd.f32 %v824, 1.0
        %v837 = vadd.f32 %v825, 1.0
        %v838 = vadd.f32 %v826, 1.0
        %v839 = vadd.f32 %v827, 1.0
        %v840 = vadd.f32 %v828, 1.0
        %v841 = vadd.f32 %v829, 1.0
        %v842 = vmul.f32 %v830, 0.5
        %v843 = vmul.f32 %v831, 0.5
        %v844 = vmul.f32 %v832, 0.5
        %v845 = vmul.f32 %v833, 0.5
        %v846 = vmul.f32 %v834, 0.5
        %v847 = vmul.f32 %v835, 0.5
        %v848 = vmul.f32 %v836, 0.5
        %v849 = vmul.f32 %v837, 0.5
        %v850 = vmul.f32 %v838, 0.5
        %v851 = vmul.f32 %v839, 0.5
        %v852 = vmul.f32 %v840, 0.5
        %v853 = vmul.f32 %v841, 0.5
        %v854 = vtanh.pop %v797
        %v855 = vtanh.pop %v799
        %v856 = vtanh.pop %v802
        %v857 = vtanh.pop %v804
        %v858 = vld [vmem:[%s271] sm:$0xff]
        %v859 = vld [vmem:[%s271 + $0x8] sm:$0xff]
        %v860 = vld [vmem:[%s271 + $0x10] sm:$0xff]
        %v861 = vld [vmem:[%s271 + $0x18] sm:$0xff]
        %v862 = vmul.f32 %v846, %v858
        %v863 = vmul.f32 %v847, %v859
        %v864 = vmul.f32 %v848, %v860
        %v865 = vmul.f32 %v849, %v861
        %v866 = vmul.f32 %v842, %v854
        %v867 = vmul.f32 %v843, %v855
        %v868 = vmul.f32 %v844, %v856
        %v869 = vmul.f32 %v845, %v857
        %v870 = vadd.f32 %v862, %v866
        %v871 = vadd.f32 %v863, %v867
        %v872 = vadd.f32 %v864, %v868
        %v873 = vadd.f32 %v865, %v869
        %v874 = vtanh.pop %v870
        %v875 = vtanh.pop %v871
        %v876 = vtanh.pop %v872
        %v877 = vtanh.pop %v873
        %v878 = vmul.f32 %v850, %v874
        %v879 = vmul.f32 %v851, %v875
        %v880 = vmul.f32 %v852, %v876
        %v881 = vmul.f32 %v853, %v877
        %882 = vst [vmem:[%s299] sm:$0xff] %v878
        %883 = vst [vmem:[%s299 + $0x8] sm:$0xff] %v879
        %884 = vst [vmem:[%s299 + $0x10] sm:$0xff] %v880
        %885 = vst [vmem:[%s299 + $0x18] sm:$0xff] %v881
        %886 = vst [vmem:[%s306] sm:$0xff] %v870
        %887 = vst [vmem:[%s306 + $0x8] sm:$0xff] %v871
        %888 = vst [vmem:[%s306 + $0x10] sm:$0xff] %v872
        %889 = vst [vmem:[%s306 + $0x18] sm:$0xff] %v873
        %s890 = sand.u32 %s125, 1
        %s891 = scalar_lea.sflag [#allocation4], %s890
        %s892 = sand.u32 %s125, 1
        %s893 = smul.addr %s892, 32
        %s894 = scalar_lea.vmem [#allocation8], %s893
        %s895 = sand.u32 %s153, 1
        %s896 = scalar_lea.sflag [#allocation10], %s895
        %s897 = sand.u32 %s153, 1
        %s898 = smul.addr %s897, 32
        %s899 = scalar_lea.vmem [#allocation9], %s898
        // Predicated region
        $region45: #{tpu_custom_call.1} parent=31 // pred_check
          %p900 = pneg %p135
        $region46: #{tpu_custom_call.1} parent=31 // pred_check_branch
          %902 = sbr.rel (%p900) target = $region48
        $region47: #{tpu_custom_call.1} parent=31 // pred_region
          %904 = vsyncadd %s891, 0
          %s905 = smul.addr %s30, 8
          %s906 = sadd.s32 %s31, %s905
          %s907 = smul.addr %s906, 8
          %s908 = scalar_lea.hbm %s3, %s907
          %s909 = sshll.u32 %s894, 4
          %s910 = int_to_ptr.vmem [resolvable:$true] %s909
          %s911 = sshll.u32 %s908, 4
          %s912 = int_to_ptr.hbm [resolvable:$true] %s911
          %917 = dma.vmem_to_hbm [thread:$0]  %s910, 512, %s912, %s891, 128, 256, 8
        $region48: #{tpu_custom_call.1} parent=31 // pred_fallthru
          _
        // Predicated region
        $region49: #{tpu_custom_call.1} parent=31 // pred_check
          %p918 = pneg %p163
        $region50: #{tpu_custom_call.1} parent=31 // pred_check_branch
          %920 = sbr.rel (%p918) target = $region52
        $region51: #{tpu_custom_call.1} parent=31 // pred_region
          %922 = vsyncadd %s896, 0
          %s923 = smul.addr %s30, 8
          %s924 = sadd.s32 %s31, %s923
          %s925 = smul.addr %s924, 8
          %s926 = scalar_lea.hbm %s4, %s925
          %s927 = sshll.u32 %s899, 4
          %s928 = int_to_ptr.vmem [resolvable:$true] %s927
          %s929 = sshll.u32 %s926, 4
          %s930 = int_to_ptr.hbm [resolvable:$true] %s929
          %935 = dma.vmem_to_hbm [thread:$0]  %s928, 512, %s930, %s896, 128, 256, 8
        $region52: #{tpu_custom_call.1} parent=31 // pred_fallthru
          _
      $region32: #{tpu_custom_call.1} parent=5 // pred_fallthru
        _
      %p936 = scmp.le.s32.totalorder 2, %s21
      // Predicated region
      $region53: #{tpu_custom_call.1} parent=5 // pred_check
        %p937 = pneg %p936
      $region54: #{tpu_custom_call.1} parent=5 // pred_check_branch
        %939 = sbr.rel (%p937) target = $region56
      $region55: #{tpu_custom_call.1} parent=5 // pred_region
        %s940 = ssub.s32 %s21, 2
        // Predicated region
        $region57: #{tpu_custom_call.1} parent=55 // pred_check
          %p941 = pneg %p141
        $region58: #{tpu_custom_call.1} parent=55 // pred_check_branch
          %943 = sbr.rel (%p941) target = $region60
        $region59: #{tpu_custom_call.1} parent=55 // pred_region
          %s944 = sand.u32 %s126, 1
          %s945 = scalar_lea.sflag [#allocation4], %s944
          %s946 = sand.u32 %s126, 1
          %s947 = smul.addr %s946, 32
          %s948 = scalar_lea.vmem [#allocation8], %s947
          %950 = dma.done %s945, 512
        $region60: #{tpu_custom_call.1} parent=55 // pred_fallthru
          _
        // Predicated region
        $region61: #{tpu_custom_call.1} parent=55 // pred_check
          %p951 = pneg %p169
        $region62: #{tpu_custom_call.1} parent=55 // pred_check_branch
          %953 = sbr.rel (%p951) target = $region64
        $region63: #{tpu_custom_call.1} parent=55 // pred_region
          %s954 = sand.u32 %s154, 1
          %s955 = scalar_lea.sflag [#allocation10], %s954
          %s956 = sand.u32 %s154, 1
          %s957 = smul.addr %s956, 32
          %s958 = scalar_lea.vmem [#allocation9], %s957
          %960 = dma.done %s955, 512
        $region64: #{tpu_custom_call.1} parent=55 // pred_fallthru
          _
      $region56: #{tpu_custom_call.1} parent=5 // pred_fallthru
        _
    $region6: #{tpu_custom_call.1} parent=1 // loop_footer
      %s25 = sadd.s32 1, %s21
    $region7: #{tpu_custom_call.1} parent=1 // loop_footer_branch
      %20 = sbr.rel target = $region3
    $region8: #{tpu_custom_call.1} parent=1 // loop_exit
      _
    %961 = vsyncpa [#allocation3], 1
    %s962 = scalar_lea.sflag [#allocation3], 1
    %963 = vsyncpa %s962, 1
    %964 = vsyncpa [#allocation6], 1
    %965 = vsyncpa [#allocation4], 1
    %s966 = scalar_lea.sflag [#allocation4], 1
    %967 = vsyncpa %s966, 1
    %968 = vsyncpa [#allocation10], 1
    %s969 = scalar_lea.sflag [#allocation10], 1
    %970 = vsyncpa %s969, 1

</llo_original>
